<compile_context>
chip_gen: v5e
topology: v5e:2x2
jax: 0.10.0
libtpu: 0.0.40
codegen_flags: <defaults>
</compile_context>

<pallas_src>
import math
from functools import partial

import numpy as np
import jax
import jax.numpy as jnp
from jax.experimental import pallas as pl
from jax.experimental.pallas import tpu as pltpu

EPS = 1e-3                        # BatchNorm2d eps
COMPUTE_DTYPE = jnp.bfloat16      # MXU-native; accumulation stays f32 in-kernel

try:
    _VMEM_CAP = int(pltpu.get_tpu_info().vmem_capacity_bytes)
except Exception:                 # conservative fallback (covers v7x's 64 MiB)
    _VMEM_CAP = 64 * 1024 * 1024
VMEM_LIMIT = int(min(_VMEM_CAP // 2, 48 * 1024 * 1024))


def _round_up(v, m):
    return ((v + m - 1) // m) * m


def _zero_map(n):
    return lambda i: (0,) * n


# ----------------------------------------------------------------------------
# Pallas kernels
# ----------------------------------------------------------------------------
def _mm_kernel(a_ref, w_ref, b_ref, o_ref, acc_ref, *, apply_relu):
    """Tiled y = relu?(A @ W + bias) with a K-reduction f32 accumulator."""
    k = pl.program_id(1)

    @pl.when(k == 0)
    def _():
        acc_ref[...] = jnp.zeros_like(acc_ref)

    acc_ref[...] += jnp.dot(a_ref[...], w_ref[...],
                            preferred_element_type=jnp.float32)

    @pl.when(k == pl.num_programs(1) - 1)
    def _():
        y = acc_ref[...] + b_ref[...]
        if apply_relu:
            y = jnp.maximum(y, 0.0)
        o_ref[...] = y.astype(o_ref.dtype)


def _res_block_kernel(*refs, plan, proj_splits, scale, apply_relu):
    """One whole Inception-ResNet block (branches + 1x1 proj + residual + ReLU).

    refs = [x, <per-branch conv refs>, proj_w, proj_b, out].
    Spatial convs are expressed as per-tap matmuls: shifted = S_t @ y gathers
    the shifted spatial rows, then shifted @ W_t accumulates the tap.
    """
    x_ref, o_ref = refs[0], refs[-1]
    wp_ref, bp_ref = refs[-3], refs[-2]
    x = x_ref[...]
    idx = 1
    branch_outs = []
    for branch in plan:
        y = x
        for conv in branch:
            if conv[0] == "mm":                                  # 1x1 conv
                w_ref, b_ref = refs[idx], refs[idx + 1]
                idx += 2
                acc = jnp.dot(y, w_ref[...],
                              preferred_element_type=jnp.float32)
            else:                                                # spatial taps
                ntaps = conv[1]
                s_ref, w_ref, b_ref = refs[idx], refs[idx + 1], refs[idx + 2]
                idx += 3
                acc = None
                for t in range(ntaps):
                    shifted = jnp.dot(s_ref[t], y,
                                      preferred_element_type=jnp.float32)
                    part = jnp.dot(shifted.astype(y.dtype), w_ref[t],
                                   preferred_element_type=jnp.float32)
                    acc = part if acc is None else acc + part
            acc = acc + b_ref[...]
            y = jnp.maximum(acc, 0.0).astype(x.dtype)
        branch_outs.append(y)
    assert idx == len(refs) - 3

    out = bp_ref[...]
    off = 0
    for y, co in zip(branch_outs, proj_splits):
        out = out + jnp.dot(y, wp_ref[off:off + co, :],
                            preferred_element_type=jnp.float32)
        off += co
    out = out * scale + x.astype(jnp.float32)
    if apply_relu:
        out = jnp.maximum(out, 0.0)
    o_ref[...] = out.astype(o_ref.dtype)


def _max_reduce_kernel(w_ref, o_ref):
    o_ref[...] = jnp.max(w_ref[...], axis=0).astype(o_ref.dtype)


def _avg_reduce_kernel(w_ref, inv_ref, o_ref):
    s = jnp.sum(w_ref[...].astype(jnp.float32), axis=0)
    o_ref[...] = (s * inv_ref[...]).astype(o_ref.dtype)


# ----------------------------------------------------------------------------
# Tiled fused matmul (conv-as-matmul + folded-BN bias + ReLU)
# ----------------------------------------------------------------------------
_MM_CACHE = {}


def _choose_m_tiling(M, target=256):
    if M <= target:
        tm = _round_up(M, 8)
        return tm, tm
    nm = -(-M // target)
    tm = _round_up(-(-M // nm), 8)
    return tm, nm * tm


def _choose_k_tiling(K):
    if K <= 1024:
        return K, K
    best = None
    lo, hi = -(-K // 768), -(-K // 256)
    for nk in range(lo, hi + 1):
        tk = _round_up(-(-K // nk), 128)
        cand = (nk * tk - K, nk, tk)
        if best is None or cand < best:
            best = cand
    return best[2], best[1] * best[2]


def matmul_bias(a, w, bias, relu=True, out_dtype=COMPUTE_DTYPE):
    """y = relu?(a @ w + bias), M/K tiled, bf16 operands, f32 accumulation."""
    M, K = a.shape
    OC = w.shape[1]
    tm, Mp = _choose_m_tiling(M)
    tk, Kp = _choose_k_tiling(K)

    a = a.astype(COMPUTE_DTYPE)
    w = w.astype(COMPUTE_DTYPE)
    if Mp != M or Kp != K:
        a = jnp.pad(a, ((0, Mp - M), (0, Kp - K)))
    if Kp != K:
        w = jnp.pad(w, ((0, Kp - K), (0, 0)))
    bias = bias.reshape(1, OC).astype(jnp.float32)

    key = (Mp, Kp, OC, tm, tk, bool(relu), jnp.dtype(out_dtype).name)
    call = _MM_CACHE.get(key)
    if call is None:
        num_m, num_k = Mp // tm, Kp // tk
        call = pl.pallas_call(
            partial(_mm_kernel, apply_relu=bool(relu)),
            out_shape=jax.ShapeDtypeStruct((Mp, OC), out_dtype),
            grid=(num_m, num_k),
            in_specs=[
                pl.BlockSpec((tm, tk), lambda m, k: (m, k)),
                pl.BlockSpec((tk, OC), lambda m, k: (k, 0)),
                pl.BlockSpec((1, OC), lambda m, k: (0, 0)),
            ],
            out_specs=pl.BlockSpec((tm, OC), lambda m, k: (m, 0)),
            scratch_shapes=[pltpu.VMEM((tm, OC), jnp.float32)],
            compiler_params=pltpu.CompilerParams(
                vmem_limit_bytes=VMEM_LIMIT,
                dimension_semantics=("parallel", "arbitrary")),
        )
        _MM_CACHE[key] = call
    y = call(a, w, bias)
    return y[:M] if Mp != M else y


# ----------------------------------------------------------------------------
# Pooling (window stacking is XLA glue, reduction runs in Pallas)
# ----------------------------------------------------------------------------
_POOL_CACHE = {}


def _pool_reduce(windows, inv=None):
    Kw, M, C = windows.shape
    mode = "max" if inv is None else "avg"
    key = (Kw, M, C, mode)
    call = _POOL_CACHE.get(key)
    if call is None:
        params = pltpu.CompilerParams(vmem_limit_bytes=VMEM_LIMIT,
                                      dimension_semantics=("arbitrary",))
        if mode == "max":
            call = pl.pallas_call(
                _max_reduce_kernel,
                out_shape=jax.ShapeDtypeStruct((M, C), COMPUTE_DTYPE),
                grid=(1,),
                in_specs=[pl.BlockSpec((Kw, M, C), _zero_map(3))],
                out_specs=pl.BlockSpec((M, C), _zero_map(2)),
                compiler_params=params,
            )
        else:
            call = pl.pallas_call(
                _avg_reduce_kernel,
                out_shape=jax.ShapeDtypeStruct((M, C), COMPUTE_DTYPE),
                grid=(1,),
                in_specs=[pl.BlockSpec((Kw, M, C), _zero_map(3)),
                          pl.BlockSpec((M, 1), _zero_map(2))],
                out_specs=pl.BlockSpec((M, C), _zero_map(2)),
                compiler_params=params,
            )
        _POOL_CACHE[key] = call
    w = windows.astype(COMPUTE_DTYPE)
    if mode == "max":
        return call(w)
    return call(w, inv.astype(jnp.float32))


def max_pool_3x3_s2(x):
    N, H, W, C = x.shape
    OH, OW = (H - 3) // 2 + 1, (W - 3) // 2 + 1
    wins = [x[:, dh:dh + (OH - 1) * 2 + 1:2, dw:dw + (OW - 1) * 2 + 1:2, :]
            for dh in range(3) for dw in range(3)]
    ws = jnp.stack(wins, 0).reshape(9, N * OH * OW, C)
    return _pool_reduce(ws).reshape(N, OH, OW, C)


def avg_pool_3x3_s1_p1(x):
    # AvgPool2d(3, stride=1, padding=1, count_include_pad=False)
    N, H, W, C = x.shape
    xp = jnp.pad(x, ((0, 0), (1, 1), (1, 1), (0, 0)))
    wins = [xp[:, dh:dh + H, dw:dw + W, :] for dh in range(3) for dw in range(3)]
    ws = jnp.stack(wins, 0).reshape(9, N * H * W, C)
    rows = np.array([sum(1 for d in (-1, 0, 1) if 0 <= h + d < H)
                     for h in range(H)], np.float32)
    cols = np.array([sum(1 for d in (-1, 0, 1) if 0 <= w + d < W)
                     for w in range(W)], np.float32)
    inv = np.tile(1.0 / np.outer(rows, cols), (N, 1, 1)).reshape(-1, 1)
    return _pool_reduce(ws, inv=jnp.asarray(inv, jnp.float32)).reshape(N, H, W, C)


def global_avg_pool(x):
    N, H, W, C = x.shape
    if H * W == 1:
        return x.reshape(N, C)
    ws = jnp.transpose(x, (1, 2, 0, 3)).reshape(H * W, N, C)
    inv = jnp.full((N, 1), 1.0 / (H * W), jnp.float32)
    return _pool_reduce(ws, inv=inv)


# ----------------------------------------------------------------------------
# im2col (JAX glue) for the non-residual convolutions
# ----------------------------------------------------------------------------
def im2col(x, kh, kw, sh, sw, ph, pw):
    """(N,H,W,C) NHWC -> (N*OH*OW, kh*kw*C), column order (kh, kw, C)."""
    N, H, W, C = x.shape
    if (kh, kw, sh, sw, ph, pw) == (1, 1, 1, 1, 0, 0):
        return x.reshape(N * H * W, C), H, W
    if ph or pw:
        x = jnp.pad(x, ((0, 0), (ph, ph), (pw, pw), (0, 0)))
    Hp, Wp = H + 2 * ph, W + 2 * pw
    OH = (Hp - kh) // sh + 1
    OW = (Wp - kw) // sw + 1
    cols = []
    for dh in range(kh):
        for dw in range(kw):
            cols.append(x[:, dh:dh + (OH - 1) * sh + 1:sh,
                          dw:dw + (OW - 1) * sw + 1:sw, :])
    a = jnp.stack(cols, axis=3)                 # (N, OH, OW, kh*kw, C)
    return a.reshape(N * OH * OW, kh * kw * C), OH, OW


# ----------------------------------------------------------------------------
# Parameters (deterministic init, BN folded at build time)
# ----------------------------------------------------------------------------
class KeyGen:
    def __init__(self, key):
        self._key = key

    def next(self):
        self._key, sub = jax.random.split(self._key)
        return sub


def trunc_normal(key, shape, std=0.1):
    # trunc_normal_(std=0.1, a=-2, b=2): bounds are 20 sigma away -> clip is
    # numerically identical in practice.
    return jnp.clip(std * jax.random.normal(key, shape, jnp.float32), -2.0, 2.0)


def uniform_bias(key, n, fan_in):
    bound = 1.0 / math.sqrt(fan_in)
    return jax.random.uniform(key, (n,), jnp.float32, -bound, bound)


def make_bconv(kg, in_c, out_c, k=(1, 1), s=(1, 1), p=(0, 0)):
    kh, kw = k
    w = trunc_normal(kg.next(), (kh, kw, in_c, out_c))          # HWIO
    gamma = jnp.ones((out_c,), jnp.float32)
    beta = jnp.zeros((out_c,), jnp.float32)
    rmean = jnp.zeros((out_c,), jnp.float32)
    rvar = jnp.ones((out_c,), jnp.float32)
    scale = gamma * jax.lax.rsqrt(rvar + EPS)                    # fold BN
    return {
        "wf": (w * scale).astype(COMPUTE_DTYPE),
        "shift": (beta - rmean * scale).astype(jnp.float32),
        "cfg": (kh, kw, s[0], s[1], p[0], p[1]),
        "ic": in_c,
        "oc": out_c,
    }


def make_stem(kg, in_c=3):
    return {
        "f": [make_bconv(kg, in_c, 32, (3, 3), (2, 2), (0, 0)),
              make_bconv(kg, 32, 32, (3, 3), (1, 1), (0, 0)),
              make_bconv(kg, 32, 64, (3, 3), (1, 1), (1, 1)),
              make_bconv(kg, 64, 80, (1, 1), (1, 1), (0, 0)),
              make_bconv(kg, 80, 192, (3, 3), (1, 1), (0, 0))],
        "b0": make_bconv(kg, 192, 96),
        "b1": [make_bconv(kg, 192, 48),
               make_bconv(kg, 48, 64, (5, 5), (1, 1), (2, 2))],
        "b2": [make_bconv(kg, 192, 64),
               make_bconv(kg, 64, 96, (3, 3), (1, 1), (1, 1)),
               make_bconv(kg, 96, 96, (3, 3), (1, 1), (1, 1))],
        "b3": make_bconv(kg, 192, 64),
    }


def make_inception_a(kg, in_c=320):
    return {
        "branches": [
            [make_bconv(kg, in_c, 32)],
            [make_bconv(kg, in_c, 32),
             make_bconv(kg, 32, 32, (3, 3), (1, 1), (1, 1))],
            [make_bconv(kg, in_c, 32),
             make_bconv(kg, 32, 48, (3, 3), (1, 1), (1, 1)),
             make_bconv(kg, 48, 64, (3, 3), (1, 1), (1, 1))],
        ],
        "proj_w": trunc_normal(kg.next(), (128, in_c)),
        "proj_b": uniform_bias(kg.next(), in_c, 128),
    }


def make_inception_b(kg, in_c=1088):
    return {
        "branches": [
            [make_bconv(kg, in_c, 192)],
            [make_bconv(kg, in_c, 128),
             make_bconv(kg, 128, 160, (1, 7), (1, 1), (0, 3)),
             make_bconv(kg, 160, 192, (7, 1), (1, 1), (3, 0))],
        ],
        "proj_w": trunc_normal(kg.next(), (384, in_c)),
        "proj_b": uniform_bias(kg.next(), in_c, 384),
    }


def make_inception_c(kg, in_c=2080):
    return {
        "branches": [
            [make_bconv(kg, in_c, 192)],
            [make_bconv(kg, in_c, 192),
             make_bconv(kg, 192, 224, (1, 3), (1, 1), (0, 1)),
             make_bconv(kg, 224, 256, (3, 1), (1, 1), (1, 0))],
        ],
        "proj_w": trunc_normal(kg.next(), (448, in_c)),
        "proj_b": uniform_bias(kg.next(), in_c, 448),
    }


def make_reduction_a(kg, in_c, k, l, m, n):
    return {
        "b0": make_bconv(kg, in_c, n, (3, 3), (2, 2), (0, 0)),
        "b1": [make_bconv(kg, in_c, k),
               make_bconv(kg, k, l, (3, 3), (1, 1), (1, 1)),
               make_bconv(kg, l, m, (3, 3), (2, 2), (0, 0))],
    }


def make_reduction_b(kg, in_c=1088):
    return {
        "b0": [make_bconv(kg, in_c, 256),
               make_bconv(kg, 256, 384, (3, 3), (2, 2), (0, 0))],
        "b1": [make_bconv(kg, in_c, 256),
               make_bconv(kg, 256, 288, (3, 3), (2, 2), (0, 0))],
        "b2": [make_bconv(kg, in_c, 256),
               make_bconv(kg, 256, 288, (3, 3), (1, 1), (1, 1)),
               make_bconv(kg, 288, 320, (3, 3), (2, 2), (0, 0))],
    }


# ----------------------------------------------------------------------------
# Apply functions
# ----------------------------------------------------------------------------
def apply_bconv(p, x):
    kh, kw, sh, sw, ph, pw = p["cfg"]
    N = x.shape[0]
    a, OH, OW = im2col(x, kh, kw, sh, sw, ph, pw)
    w2d = p["wf"].reshape(kh * kw * p["ic"], p["oc"])
    y = matmul_bias(a, w2d, p["shift"], relu=True)
    return y.reshape(N, OH, OW, p["oc"])


def apply_fused_1x1(ps, x):
    """Several 1x1 BasicConv2d heads sharing one input -> one lane-dense matmul."""
    N, H, W, C = x.shape
    a = x.reshape(N * H * W, C)
    w = jnp.concatenate([p["wf"].reshape(C, p["oc"]) for p in ps], axis=1)
    b = jnp.concatenate([p["shift"] for p in ps])
    y = matmul_bias(a, w, b, relu=True)
    outs, off = [], 0
    for p in ps:
        outs.append(y[:, off:off + p["oc"]].reshape(N, H, W, p["oc"]))
        off += p["oc"]
    return outs


# -------- fused Inception-ResNet residual blocks (one kernel per block) ------
_BLOCK_CACHE = {}
_SHIFT_CACHE = {}


def _shift_matrices(N, H, W, kh, kw, ph, pw):
    """(kh*kw, M, M) 0/1 row-shift matrices realizing a stride-1 'same' conv."""
    key = (N, H, W, kh, kw, ph, pw)
    s = _SHIFT_CACHE.get(key)
    if s is not None:
        return s
    M = N * H * W
    S = np.zeros((kh * kw, M, M), np.float32)

    def rid(n, h, w):
        return (n * H + h) * W + w

    for dh in range(kh):
        for dw in range(kw):
            t = dh * kw + dw
            for n in range(N):
                for oh in range(H):
                    for ow in range(W):
                        ih, iw = oh + dh - ph, ow + dw - pw
                        if 0 <= ih < H and 0 <= iw < W:
                            S[t, rid(n, oh, ow), rid(n, ih, iw)] = 1.0
    s = jnp.asarray(S, COMPUTE_DTYPE)
    _SHIFT_CACHE[key] = s
    return s


def apply_res_block(name, p, x, scale, relu):
    """Whole Inception-ResNet-{A,B,C} block as ONE Pallas kernel."""
    N, H, W, C = x.shape
    M = N * H * W
    args = [x.reshape(M, C).astype(COMPUTE_DTYPE)]
    plan = []
    for branch in p["branches"]:
        bplan = []
        for q in branch:
            kh, kw, sh, sw, ph, pw = q["cfg"]
            assert sh == 1 and sw == 1
            degenerate = (kh == 1 or H == 1) and (kw == 1 or W == 1)
            if degenerate:
                # only the center tap can contribute -> plain 1x1 matmul
                dh = ph if kh > 1 else 0
                dw = pw if kw > 1 else 0
                bplan.append(("mm",))
                args.append(q["wf"][dh, dw])                    # (ic, oc)
            else:
                bplan.append(("taps", kh * kw))
                args.append(_shift_matrices(N, H, W, kh, kw, ph, pw))
                args.append(q["wf"].reshape(kh * kw, q["ic"], q["oc"]))
            args.append(q["shift"].reshape(1, q["oc"]))
        plan.append(tuple(bplan))
    args.append(p["proj_w"].astype(COMPUTE_DTYPE))
    args.append(p["proj_b"].reshape(1, C).astype(jnp.float32))
    proj_splits = tuple(br[-1]["oc"] for br in p["branches"])

    key = (name, N, H, W, C, float(scale), bool(relu))
    call = _BLOCK_CACHE.get(key)
    if call is None:
        kern = partial(_res_block_kernel, plan=tuple(plan),
                       proj_splits=proj_splits, scale=float(scale),
                       apply_relu=bool(relu))
        call = pl.pallas_call(
            kern,
            out_shape=jax.ShapeDtypeStruct((M, C), COMPUTE_DTYPE),
            grid=(1,),
            in_specs=[pl.BlockSpec(tuple(a.shape), _zero_map(a.ndim))
                      for a in args],
            out_specs=pl.BlockSpec((M, C), _zero_map(2)),
            compiler_params=pltpu.CompilerParams(
                vmem_limit_bytes=VMEM_LIMIT,
                dimension_semantics=("arbitrary",)),
        )
        _BLOCK_CACHE[key] = call
    return call(*args).reshape(N, H, W, C)


# ------------------------------- network parts ------------------------------
def apply_stem(p, x):
    f = p["f"]
    x = apply_bconv(f[0], x)
    x = apply_bconv(f[1], x)
    x = apply_bconv(f[2], x)
    x = max_pool_3x3_s2(x)
    x = apply_bconv(f[3], x)
    x = apply_bconv(f[4], x)
    x = max_pool_3x3_s2(x)
    # fused 1x1 heads of the three conv branches (shared input)
    b0, h1, h2 = apply_fused_1x1([p["b0"], p["b1"][0], p["b2"][0]], x)
    b1 = apply_bconv(p["b1"][1], h1)
    b2 = apply_bconv(p["b2"][1], h2)
    b2 = apply_bconv(p["b2"][2], b2)
    b3 = apply_bconv(p["b3"], avg_pool_3x3_s1_p1(x))
    return jnp.concatenate([b0, b1, b2, b3], axis=-1)           # 320 channels


def apply_reduction_a(p, x):
    b0 = apply_bconv(p["b0"], x)
    b1 = x
    for q in p["b1"]:
        b1 = apply_bconv(q, b1)
    b2 = max_pool_3x3_s2(x)
    return jnp.concatenate([b0, b1, b2], axis=-1)               # 1088 channels


def apply_reduction_b(p, x):
    h0, h1, h2 = apply_fused_1x1([p["b0"][0], p["b1"][0], p["b2"][0]], x)
    b0 = apply_bconv(p["b0"][1], h0)
    b1 = apply_bconv(p["b1"][1], h1)
    b2 = apply_bconv(p["b2"][1], h2)
    b2 = apply_bconv(p["b2"][2], b2)
    b3 = max_pool_3x3_s2(x)
    return jnp.concatenate([b0, b1, b2, b3], axis=-1)           # 2080 channels


def build_model(kg, num_classes=1000, k=256, l=256, m=384, n=384):
    return {
        "stem": make_stem(kg, 3),
        "a": [make_inception_a(kg, 320) for _ in range(10)],
        "ra": make_reduction_a(kg, 320, k, l, m, n),
        "b": [make_inception_b(kg, 1088) for _ in range(20)],
        "rb": make_reduction_b(kg, 1088),
        "c": [make_inception_c(kg, 2080) for _ in range(10)],
        "final_conv": make_bconv(kg, 2080, 1536),
        "linear_w": trunc_normal(kg.next(), (1536, num_classes)),
        "linear_b": uniform_bias(kg.next(), num_classes, 1536),
    }


def forward(params, x_nchw):
    x = jnp.transpose(x_nchw, (0, 2, 3, 1)).astype(COMPUTE_DTYPE)  # NCHW->NHWC
    x = apply_stem(params["stem"], x)
    for p in params["a"]:
        x = apply_res_block("A", p, x, 0.17, relu=True)
    x = apply_reduction_a(params["ra"], x)
    for p in params["b"]:
        x = apply_res_block("B", p, x, 0.1, relu=True)
    x = apply_reduction_b(params["rb"], x)
    n_c = len(params["c"])
    for i, p in enumerate(params["c"]):
        x = apply_res_block("C", p, x, 0.2, relu=(i < n_c - 1))
    x = apply_bconv(params["final_conv"], x)                       # (N,h,w,1536)
    pooled = global_avg_pool(x)                                    # (N, 1536)
    logits = matmul_bias(pooled, params["linear_w"], params["linear_b"],
                         relu=False, out_dtype=jnp.float32)
    return logits


# ----------------------------------------------------------------------------
if __name__ == "__main__":
    root = jax.random.PRNGKey(0)
    k_x, k_params = jax.random.split(root)

    # Smallest spatial size that survives the stem + both reductions is 75.
    x = jax.random.normal(k_x, (2, 3, 75, 75), jnp.float32)        # NCHW input
    params = build_model(KeyGen(k_params), num_classes=1000)

    logits = forward(params, x)
    logits = jax.block_until_ready(logits)

    assert logits.shape == (2, 1000), logits.shape
    assert bool(jnp.all(jnp.isfinite(logits)))
    print("KERNEL_OK")
</pallas_src>

<mosaic_0001>
module attributes {stable_mosaic.version = 11 : i64} {
  func.func @_mm_kernel(%arg0: i32, %arg1: i32, %arg2: memref<256x27xbf16, #tpu.memory_space<vmem>>, %arg3: memref<27x32xbf16, #tpu.memory_space<vmem>>, %arg4: memref<1x32xf32, #tpu.memory_space<vmem>>, %arg5: memref<256x32xbf16, #tpu.memory_space<vmem>>, %arg6: memref<256x32xf32, #tpu.memory_space<vmem>>) attributes {dimension_semantics = [#tpu.dimension_semantics<parallel>, #tpu.dimension_semantics<arbitrary>], iteration_bounds = array<i64: 11, 1>, scalar_prefetch = 0 : i64, scratch_operands = 1 : i64, tpu.core_type = #tpu.core_type<tc>, window_params = [{transform_indices = @transform_0, window_bounds = array<i64: 256, 27>}, {transform_indices = @transform_1, window_bounds = array<i64: 27, 32>}, {pipeline_mode = #tpu.pipeline_mode<synchronous>, transform_indices = @transform_2, window_bounds = array<i64: 1, 32>}, {transform_indices = @transform_3, window_bounds = array<i64: 256, 32>}]} {
    %c0_i32 = arith.constant 0 : i32
    %0 = arith.cmpi eq, %arg1, %c0_i32 : i32
    %1 = arith.extui %0 : i1 to i32
    %c0_i32_0 = arith.constant 0 : i32
    %2 = arith.cmpi ne, %1, %c0_i32_0 : i32
    scf.if %2 {
      %cst_10 = arith.constant 0.000000e+00 : f32
      %12 = vector.broadcast %cst_10 : f32 to vector<256x32xf32>
      %c0_11 = arith.constant 0 : index
      %c0_12 = arith.constant 0 : index
      %13 = vector.load %arg6[%c0_11, %c0_12] : memref<256x32xf32, #tpu.memory_space<vmem>>, vector<256x32xf32>
      tpu.vector_store %arg6[%c0_11, %c0_12], %12 {strides = array<i32>} : memref<256x32xf32, #tpu.memory_space<vmem>>, vector<256x32xf32>,
    } else {
    }
    %c0 = arith.constant 0 : index
    %c0_1 = arith.constant 0 : index
    %3 = vector.load %arg6[%c0, %c0_1] : memref<256x32xf32, #tpu.memory_space<vmem>>, vector<256x32xf32>
    %c0_2 = arith.constant 0 : index
    %c0_3 = arith.constant 0 : index
    %4 = vector.load %arg2[%c0_2, %c0_3] : memref<256x27xbf16, #tpu.memory_space<vmem>>, vector<256x27xbf16>
    %c0_4 = arith.constant 0 : index
    %c0_5 = arith.constant 0 : index
    %5 = vector.load %arg3[%c0_4, %c0_5] : memref<27x32xbf16, #tpu.memory_space<vmem>>, vector<27x32xbf16>
    %cst = arith.constant dense<0.000000e+00> : vector<256x32xf32>
    %6 = tpu.matmul %4, %5, %cst {dimension_numbers = #tpu.dot_dimension_numbers<[1], [0], [0], [1], [0, 0, 1, 1], [], []>} : vector<256x27xbf16>, vector<27x32xbf16>, vector<256x32xf32> -> vector<256x32xf32>
    %7 = arith.addf %3, %6 : vector<256x32xf32>
    %c0_6 = arith.constant 0 : index
    %c0_7 = arith.constant 0 : index
    %8 = vector.load %arg6[%c0_6, %c0_7] : memref<256x32xf32, #tpu.memory_space<vmem>>, vector<256x32xf32>
    tpu.vector_store %arg6[%c0_6, %c0_7], %7 {strides = array<i32>} : memref<256x32xf32, #tpu.memory_space<vmem>>, vector<256x32xf32>,
    %c0_i32_8 = arith.constant 0 : i32
    %9 = arith.cmpi eq, %arg1, %c0_i32_8 : i32
    %10 = arith.extui %9 : i1 to i32
    %c0_i32_9 = arith.constant 0 : i32
    %11 = arith.cmpi ne, %10, %c0_i32_9 : i32
    scf.if %11 {
      %c0_10 = arith.constant 0 : index
      %c0_11 = arith.constant 0 : index
      %12 = vector.load %arg6[%c0_10, %c0_11] : memref<256x32xf32, #tpu.memory_space<vmem>>, vector<256x32xf32>
      %c0_12 = arith.constant 0 : index
      %c0_13 = arith.constant 0 : index
      %13 = vector.load %arg4[%c0_12, %c0_13] : memref<1x32xf32, #tpu.memory_space<vmem>>, vector<1x32xf32>
      %14 = vector.broadcast %13 : vector<1x32xf32> to vector<256x32xf32>
      %15 = arith.addf %12, %14 : vector<256x32xf32>
      %cst_14 = arith.constant 0.000000e+00 : f32
      %16 = vector.broadcast %cst_14 : f32 to vector<256x32xf32>
      %17 = arith.maximumf %15, %16 : vector<256x32xf32>
      %18 = arith.truncf %17 : vector<256x32xf32> to vector<256x32xbf16>
      %c0_15 = arith.constant 0 : index
      %c0_16 = arith.constant 0 : index
      %19 = vector.load %arg5[%c0_15, %c0_16] : memref<256x32xbf16, #tpu.memory_space<vmem>>, vector<256x32xbf16>
      tpu.vector_store %arg5[%c0_15, %c0_16], %18 {strides = array<i32>} : memref<256x32xbf16, #tpu.memory_space<vmem>>, vector<256x32xbf16>,
    } else {
    }
    return
  }
  func.func @transform_0(%arg0: i32, %arg1: i32) -> (i32, i32) {
    %c0_i32 = arith.constant 0 : i32
    return %arg0, %arg1 : i32, i32
  }
  func.func @transform_1(%arg0: i32, %arg1: i32) -> (i32, i32) {
    %c0_i32 = arith.constant 0 : i32
    %c0_i32_0 = arith.constant 0 : i32
    return %arg1, %c0_i32 : i32, i32
  }
  func.func @transform_2(%arg0: i32, %arg1: i32) -> (i32, i32) {
    %c0_i32 = arith.constant 0 : i32
    %c0_i32_0 = arith.constant 0 : i32
    %c0_i32_1 = arith.constant 0 : i32
    return %c0_i32, %c0_i32_0 : i32, i32
  }
  func.func @transform_3(%arg0: i32, %arg1: i32) -> (i32, i32) {
    %c0_i32 = arith.constant 0 : i32
    %c0_i32_0 = arith.constant 0 : i32
    return %arg0, %c0_i32 : i32, i32
  }
}

</mosaic_0001>

<llo_original>
// kernel: tpu_custom_call.1
$region0: #{tpu_custom_call.1}
  #allocation0 [shape = 'u32[]', space=smem, size = 0x4, offset = 0x4, fixed_abs, tag = 'smem constant byte address 0x4 - core index']
  #allocation1 [shape = 'u32[72,128]{1,0:T(1,128)}', space=vmem, size = 0x9000, scoped, tag = 'internal scratch']
  #allocation2 [shape = 'f32[256,32]{1,0:T(8,128)}', space=vmem, size = 0x20000, scoped, tag = 'scratch operand']
  %s0 = inlined_call_operand.vmem [shape: bf16[2816,27], index: 0, kind: input, shape index: {}]
  %s1 = inlined_call_operand.vmem [shape: bf16[27,32], index: 1, kind: input, shape index: {}]
  %s2 = inlined_call_operand.vmem [shape: f32[1,32], index: 2, kind: input, shape index: {}]
  %s3 = inlined_call_operand.vmem [shape: bf16[2816,32], index: 3, kind: output, shape index: {}]
  %s4 = sld [smem:[#allocation0]]
  $region53: #{tpu_custom_call.1} parent=0
    _
  %s6 = ssub.s32 1, %s4
  %s7 = scalar_select 0, %s6, %s4
  loop: start=0, step=1, limit=13
  $region2: #{tpu_custom_call.1} parent=0 // loop_pre_header
    _
  $region3: #{tpu_custom_call.1} parent=0 // loop_header
    %s9 = sphi 0, %s13
    %p10 = scmp.ge.s32.totalorder %s9, 13
    %s16 = sphi 0, %s28
    %s17 = sphi 0, %s24
    %s18 = sphi 0, %s16
    %s19 = sphi 0, %s17
    %s20 = sphi 0, %s18
    %s21 = sphi 0, %s19
    %s33 = sphi 0, %s35
    %s36 = sphi 0, %s33
    %s37 = sphi 0, %s36
    %s53 = sphi 0, %s37
    %s59 = sphi 0, %s61
    %s62 = sphi 0, %s59
    %s63 = sphi 0, %s62
    %s79 = sphi 0, %s63
    %s83 = sphi 0, %s83
    %s85 = sphi 0, %s83
    %s86 = sphi 0, %s85
    %s100 = sphi 0, %s86
    %s106 = sphi 0, %s108
    %s109 = sphi 0, %s106
    %s110 = sphi 0, %s109
    %s126 = sphi 0, %s110
  $region4: #{tpu_custom_call.1} parent=0 // loop_header_branch
    %12 = sbr.rel (%p10) target = $region8
  $region5: #{tpu_custom_call.1} parent=0 // loop_body
    %s14 = ssub.s32 %s9, 1
    %s15 = ssub.s32 %s9, 2
    %s22 = sadd.s32 1, %s17
    %p23 = scmp.ge.s32.totalorder %s22, 1
    %s24 = scalar_select %p23, 0, %s22
    %s25 = sadd.s32 1, %s16
    %s26 = scalar_select %p23, %s25, %s16
    %p27 = scmp.ge.s32.totalorder %s26, 11
    %s28 = scalar_select %p27, 0, %s26
    %s29 = ssub.s32 %s16, %s28
    %s30 = ssub.s32 %s17, %s24
    %s31 = sor.u32 %s29, %s30
    %p32 = scmp.eq.s32.totalorder %s31, 0
    %s34 = sadd.s32 %s33, 1
    %s35 = scalar_select %p32, %s33, %s34
    %p38 = pneg %p32
    %p39 = scmp.eq.s32.totalorder %s9, 10
    %p40 = por %p38, %p39
    %p41 = scmp.ne.s32.totalorder %s33, %s36
    %p42 = scmp.eq.s32.totalorder %s9, 0
    %p43 = por %p41, %p42
    %p44 = scmp.ne.s32.totalorder %s33, %s36
    %p45 = scmp.eq.s32.totalorder %s14, 10
    %p46 = por %p44, %p45
    %p47 = scmp.ne.s32.totalorder %s36, %s37
    %p48 = scmp.eq.s32.totalorder %s14, 0
    %p49 = por %p47, %p48
    %p50 = scmp.ne.s32.totalorder %s36, %s37
    %p51 = scmp.eq.s32.totalorder %s15, 10
    %p52 = por %p50, %p51
    %p54 = scmp.ne.s32.totalorder %s37, %s53
    %p55 = scmp.eq.s32.totalorder %s15, 0
    %p56 = por %p54, %p55
    %s57 = ssub.s32 %s17, %s24
    %p58 = scmp.eq.s32.totalorder %s57, 0
    %s60 = sadd.s32 %s59, 1
    %s61 = scalar_select %p58, %s59, %s60
    %p64 = pneg %p58
    %p65 = scmp.eq.s32.totalorder %s9, 10
    %p66 = por %p64, %p65
    %p67 = scmp.ne.s32.totalorder %s59, %s62
    %p68 = scmp.eq.s32.totalorder %s9, 0
    %p69 = por %p67, %p68
    %p70 = scmp.ne.s32.totalorder %s59, %s62
    %p71 = scmp.eq.s32.totalorder %s14, 10
    %p72 = por %p70, %p71
    %p73 = scmp.ne.s32.totalorder %s62, %s63
    %p74 = scmp.eq.s32.totalorder %s14, 0
    %p75 = por %p73, %p74
    %p76 = scmp.ne.s32.totalorder %s62, %s63
    %p77 = scmp.eq.s32.totalorder %s15, 10
    %p78 = por %p76, %p77
    %p80 = scmp.ne.s32.totalorder %s63, %s79
    %p81 = scmp.eq.s32.totalorder %s15, 0
    %p82 = por %p80, %p81
    %s84 = sadd.s32 %s83, 1
    %p87 = scmp.eq.s32.totalorder %s9, 10
    %p88 = scmp.ne.s32.totalorder %s83, %s85
    %p89 = scmp.eq.s32.totalorder %s9, 0
    %p90 = por %p88, %p89
    %p91 = scmp.ne.s32.totalorder %s83, %s85
    %p92 = scmp.eq.s32.totalorder %s14, 10
    %p93 = por %p91, %p92
    %p94 = scmp.ne.s32.totalorder %s85, %s86
    %p95 = scmp.eq.s32.totalorder %s14, 0
    %p96 = por %p94, %p95
    %p97 = scmp.ne.s32.totalorder %s85, %s86
    %p98 = scmp.eq.s32.totalorder %s15, 10
    %p99 = por %p97, %p98
    %p101 = scmp.ne.s32.totalorder %s86, %s100
    %p102 = scmp.eq.s32.totalorder %s15, 0
    %p103 = por %p101, %p102
    %s104 = ssub.s32 %s16, %s28
    %p105 = scmp.eq.s32.totalorder %s104, 0
    %s107 = sadd.s32 %s106, 1
    %s108 = scalar_select %p105, %s106, %s107
    %p111 = pneg %p105
    %p112 = scmp.eq.s32.totalorder %s9, 10
    %p113 = por %p111, %p112
    %p114 = scmp.ne.s32.totalorder %s106, %s109
    %p115 = scmp.eq.s32.totalorder %s9, 0
    %p116 = por %p114, %p115
    %p117 = scmp.ne.s32.totalorder %s106, %s109
    %p118 = scmp.eq.s32.totalorder %s14, 10
    %p119 = por %p117, %p118
    %p120 = scmp.ne.s32.totalorder %s109, %s110
    %p121 = scmp.eq.s32.totalorder %s14, 0
    %p122 = por %p120, %p121
    %p123 = scmp.ne.s32.totalorder %s109, %s110
    %p124 = scmp.eq.s32.totalorder %s15, 10
    %p125 = por %p123, %p124
    %p127 = scmp.ne.s32.totalorder %s110, %s126
    %p128 = scmp.eq.s32.totalorder %s15, 0
    %p129 = por %p127, %p128
    %p130 = scmp.le.s32.totalorder 1, %s9
    %p131 = scmp.lt.s32.totalorder %s9, 12
    %p132 = pnand %p130, %p131
    %p133 = pneg %p132
    // Predicated region
    $region9: #{tpu_custom_call.1} parent=5 // pred_check
      _
    $region10: #{tpu_custom_call.1} parent=5 // pred_check_branch
      %135 = sbr.rel (%p132) target = $region12
    $region11: #{tpu_custom_call.1} parent=5 // pred_region
      %s136 = ssub.s32 %s9, 1
      // Predicated region
      $region13: #{tpu_custom_call.1} parent=11 // pred_check
        %p137 = pneg %p75
      $region14: #{tpu_custom_call.1} parent=11 // pred_check_branch
        %139 = sbr.rel (%p137) target = $region16
      $region15: #{tpu_custom_call.1} parent=11 // pred_region
        %s140 = smul.u32 4, %s19
        %p141 = scmp.lt.s32.totalorder %s140, 3
        %s142 = scalar_select %p141, %s140, 3
        %s143 = smul.addr %s142, 4
        %s144 = scalar_lea.vmem %s1, %s143
        %s145 = smul.u32 4, %s19
      $region16: #{tpu_custom_call.1} parent=11 // pred_fallthru
        _
      // Predicated region
      $region17: #{tpu_custom_call.1} parent=11 // pred_check
        %p146 = pneg %p96
      $region18: #{tpu_custom_call.1} parent=11 // pred_check_branch
        %148 = sbr.rel (%p146) target = $region20
      $region19: #{tpu_custom_call.1} parent=11 // pred_region
        _
      $region20: #{tpu_custom_call.1} parent=11 // pred_fallthru
        _
    $region12: #{tpu_custom_call.1} parent=5 // pred_fallthru
      _
    %p149 = scmp.lt.s32.totalorder %s9, 11
    // Predicated region
    $region21: #{tpu_custom_call.1} parent=5 // pred_check
      %p150 = pneg %p149
    $region22: #{tpu_custom_call.1} parent=5 // pred_check_branch
      %152 = sbr.rel (%p150) target = $region24
    $region23: #{tpu_custom_call.1} parent=5 // pred_region
      // Predicated region
      $region25: #{tpu_custom_call.1} parent=23 // pred_check
        %p153 = pneg %p43
      $region26: #{tpu_custom_call.1} parent=23 // pred_check_branch
        %155 = sbr.rel (%p153) target = $region28
      $region27: #{tpu_custom_call.1} parent=23 // pred_region
        %s156 = smul.u32 32, %s16
        %p157 = scmp.lt.s32.totalorder %s156, 351
        %s158 = scalar_select %p157, %s156, 351
        %p159 = scmp.lt.s32.totalorder %s17, 0
        %s160 = scalar_select %p159, %s17, 0
        %s161 = sadd.s32 %s160, %s158
        %s162 = smul.addr %s161, 4
        %s163 = scalar_lea.vmem %s0, %s162
        %s164 = smul.u32 32, %s16
      $region28: #{tpu_custom_call.1} parent=23 // pred_fallthru
        _
    $region24: #{tpu_custom_call.1} parent=5 // pred_fallthru
      _
    %p165 = scmp.le.s32.totalorder 1, %s9
    %p166 = scmp.lt.s32.totalorder %s9, 12
    %p167 = pnand %p165, %p166
    %p168 = pneg %p167
    // Predicated region
    $region29: #{tpu_custom_call.1} parent=5 // pred_check
      _
    $region30: #{tpu_custom_call.1} parent=5 // pred_check_branch
      %170 = sbr.rel (%p167) target = $region32
    $region31: #{tpu_custom_call.1} parent=5 // pred_region
      %s171 = ssub.s32 %s9, 1
      %s172 = smul.u32 32, %s18
      %p173 = scmp.lt.s32.totalorder %s172, 351
      %s174 = scalar_select %p173, %s172, 351
      %p175 = scmp.lt.s32.totalorder %s19, 0
      %s176 = scalar_select %p175, %s19, 0
      %s177 = sadd.s32 %s176, %s174
      %s178 = smul.addr %s177, 4
      %s179 = scalar_lea.vmem %s0, %s178
      %p180 = pneg %p49
      %p181 = pneg %p46
      %s182 = smul.u32 4, %s19
      %p183 = scmp.lt.s32.totalorder %s182, 3
      %s184 = scalar_select %p183, %s182, 3
      %s185 = smul.addr %s184, 4
      %s186 = scalar_lea.vmem %s1, %s185
      %p187 = pneg %p75
      %p188 = pneg %p72
      %p189 = pneg %p96
      %p190 = pneg %p93
      %p191 = pneg %p122
      %p192 = pneg %p119
      %s193 = smul.u32 32, %s18
      %p194 = scmp.lt.s32.totalorder %s193, 351
      %s195 = scalar_select %p194, %s193, 351
      %s196 = smul.addr %s195, 4
      %s197 = scalar_lea.vmem %s3, %s196
      %s198 = smul.u32 32, %s18
      %p199 = scmp.lt.s32.totalorder %s198, 351
      %s200 = scalar_select %p199, %s198, 351
      %p201 = scmp.lt.s32.totalorder %s19, 0
      %s202 = scalar_select %p201, %s19, 0
      %s203 = sadd.s32 %s202, %s200
      %s204 = smul.addr %s203, 4
      %s205 = scalar_lea.vmem %s0, %s204
      %s206 = smul.u32 32, %s18
      %s207 = smul.u32 4, %s19
      %p208 = scmp.lt.s32.totalorder %s207, 3
      %s209 = scalar_select %p208, %s207, 3
      %s210 = smul.addr %s209, 4
      %s211 = scalar_lea.vmem %s1, %s210
      %s212 = smul.u32 4, %s19
      %s213 = smul.u32 32, %s18
      %p214 = scmp.lt.s32.totalorder %s213, 351
      %s215 = scalar_select %p214, %s213, 351
      %s216 = smul.addr %s215, 4
      %s217 = scalar_lea.vmem %s3, %s216
      %s218 = smul.u32 32, %s18
      %p220 = scmp.eq.s32.totalorder %s19, 0
      // Predicated region
      $region33: #{tpu_custom_call.1} parent=31 // pred_check
        %p221 = pneg %p220
      $region34: #{tpu_custom_call.1} parent=31 // pred_check_branch
        %223 = sbr.rel (%p221) target = $region36
      $region35: #{tpu_custom_call.1} parent=31 // pred_region
        %vm224 = vcmask 261120
        %225 = vst.msk [vmem:[#allocation2] sm:$0xff] %vm224, 0.0
        %226 = vst.msk [vmem:[#allocation2 + $0x8] sm:$0xff] %vm224, 0.0
        %227 = vst.msk [vmem:[#allocation2 + $0x10] sm:$0xff] %vm224, 0.0
        %228 = vst.msk [vmem:[#allocation2 + $0x18] sm:$0xff] %vm224, 0.0
        %229 = vst.msk [vmem:[#allocation2 + $0x20] sm:$0xff] %vm224, 0.0
        %230 = vst.msk [vmem:[#allocation2 + $0x28] sm:$0xff] %vm224, 0.0
        %231 = vst.msk [vmem:[#allocation2 + $0x30] sm:$0xff] %vm224, 0.0
        %232 = vst.msk [vmem:[#allocation2 + $0x38] sm:$0xff] %vm224, 0.0
        %233 = vst.msk [vmem:[#allocation2 + $0x40] sm:$0xff] %vm224, 0.0
        %234 = vst.msk [vmem:[#allocation2 + $0x48] sm:$0xff] %vm224, 0.0
        %235 = vst.msk [vmem:[#allocation2 + $0x50] sm:$0xff] %vm224, 0.0
        %236 = vst.msk [vmem:[#allocation2 + $0x58] sm:$0xff] %vm224, 0.0
        %237 = vst.msk [vmem:[#allocation2 + $0x60] sm:$0xff] %vm224, 0.0
        %238 = vst.msk [vmem:[#allocation2 + $0x68] sm:$0xff] %vm224, 0.0
        %239 = vst.msk [vmem:[#allocation2 + $0x70] sm:$0xff] %vm224, 0.0
        %240 = vst.msk [vmem:[#allocation2 + $0x78] sm:$0xff] %vm224, 0.0
        %241 = vst.msk [vmem:[#allocation2 + $0x80] sm:$0xff] %vm224, 0.0
        %242 = vst.msk [vmem:[#allocation2 + $0x88] sm:$0xff] %vm224, 0.0
        %243 = vst.msk [vmem:[#allocation2 + $0x90] sm:$0xff] %vm224, 0.0
        %244 = vst.msk [vmem:[#allocation2 + $0x98] sm:$0xff] %vm224, 0.0
        %245 = vst.msk [vmem:[#allocation2 + $0xa0] sm:$0xff] %vm224, 0.0
        %246 = vst.msk [vmem:[#allocation2 + $0xa8] sm:$0xff] %vm224, 0.0
        %247 = vst.msk [vmem:[#allocation2 + $0xb0] sm:$0xff] %vm224, 0.0
        %248 = vst.msk [vmem:[#allocation2 + $0xb8] sm:$0xff] %vm224, 0.0
        %249 = vst.msk [vmem:[#allocation2 + $0xc0] sm:$0xff] %vm224, 0.0
        %250 = vst.msk [vmem:[#allocation2 + $0xc8] sm:$0xff] %vm224, 0.0
        %251 = vst.msk [vmem:[#allocation2 + $0xd0] sm:$0xff] %vm224, 0.0
        %252 = vst.msk [vmem:[#allocation2 + $0xd8] sm:$0xff] %vm224, 0.0
        %253 = vst.msk [vmem:[#allocation2 + $0xe0] sm:$0xff] %vm224, 0.0
        %254 = vst.msk [vmem:[#allocation2 + $0xe8] sm:$0xff] %vm224, 0.0
        %255 = vst.msk [vmem:[#allocation2 + $0xf0] sm:$0xff] %vm224, 0.0
        %256 = vst.msk [vmem:[#allocation2 + $0xf8] sm:$0xff] %vm224, 0.0
      $region36: #{tpu_custom_call.1} parent=31 // pred_fallthru
        _
      %v257 = vld [vmem:[#allocation2] sm:$0xff]
      %v258 = vld [vmem:[#allocation2 + $0x8] sm:$0xff]
      %v259 = vld [vmem:[#allocation2 + $0x10] sm:$0xff]
      %v260 = vld [vmem:[#allocation2 + $0x18] sm:$0xff]
      %v261 = vld [vmem:[#allocation2 + $0x20] sm:$0xff]
      %v262 = vld [vmem:[#allocation2 + $0x28] sm:$0xff]
      %v263 = vld [vmem:[#allocation2 + $0x30] sm:$0xff]
      %v264 = vld [vmem:[#allocation2 + $0x38] sm:$0xff]
      %v265 = vld [vmem:[#allocation2 + $0x40] sm:$0xff]
      %v266 = vld [vmem:[#allocation2 + $0x48] sm:$0xff]
      %v267 = vld [vmem:[#allocation2 + $0x50] sm:$0xff]
      %v268 = vld [vmem:[#allocation2 + $0x58] sm:$0xff]
      %v269 = vld [vmem:[#allocation2 + $0x60] sm:$0xff]
      %v270 = vld [vmem:[#allocation2 + $0x68] sm:$0xff]
      %v271 = vld [vmem:[#allocation2 + $0x70] sm:$0xff]
      %v272 = vld [vmem:[#allocation2 + $0x78] sm:$0xff]
      %v273 = vld [vmem:[#allocation2 + $0x80] sm:$0xff]
      %v274 = vld [vmem:[#allocation2 + $0x88] sm:$0xff]
      %v275 = vld [vmem:[#allocation2 + $0x90] sm:$0xff]
      %v276 = vld [vmem:[#allocation2 + $0x98] sm:$0xff]
      %v277 = vld [vmem:[#allocation2 + $0xa0] sm:$0xff]
      %v278 = vld [vmem:[#allocation2 + $0xa8] sm:$0xff]
      %v279 = vld [vmem:[#allocation2 + $0xb0] sm:$0xff]
      %v280 = vld [vmem:[#allocation2 + $0xb8] sm:$0xff]
      %v281 = vld [vmem:[#allocation2 + $0xc0] sm:$0xff]
      %v282 = vld [vmem:[#allocation2 + $0xc8] sm:$0xff]
      %v283 = vld [vmem:[#allocation2 + $0xd0] sm:$0xff]
      %v284 = vld [vmem:[#allocation2 + $0xd8] sm:$0xff]
      %v285 = vld [vmem:[#allocation2 + $0xe0] sm:$0xff]
      %v286 = vld [vmem:[#allocation2 + $0xe8] sm:$0xff]
      %v287 = vld [vmem:[#allocation2 + $0xf0] sm:$0xff]
      %v288 = vld [vmem:[#allocation2 + $0xf8] sm:$0xff]
      %v289 = vld [vmem:[%s205] sm:$0xf]
      %v290 = vld [vmem:[%s205 + $0x4] sm:$0xf]
      %v291 = vld [vmem:[%s205 + $0x8] sm:$0xf]
      %v292 = vld [vmem:[%s205 + $0xc] sm:$0xf]
      %v293 = vld [vmem:[%s205 + $0x10] sm:$0xf]
      %v294 = vld [vmem:[%s205 + $0x14] sm:$0xf]
      %v295 = vld [vmem:[%s205 + $0x18] sm:$0xf]
      %v296 = vld [vmem:[%s205 + $0x1c] sm:$0xf]
      %v297 = vld [vmem:[%s205 + $0x20] sm:$0xf]
      %v298 = vld [vmem:[%s205 + $0x24] sm:$0xf]
      %v299 = vld [vmem:[%s205 + $0x28] sm:$0xf]
      %v300 = vld [vmem:[%s205 + $0x2c] sm:$0xf]
      %v301 = vld [vmem:[%s205 + $0x30] sm:$0xf]
      %v302 = vld [vmem:[%s205 + $0x34] sm:$0xf]
      %v303 = vld [vmem:[%s205 + $0x38] sm:$0xf]
      %v304 = vld [vmem:[%s205 + $0x3c] sm:$0xf]
      %v305 = vld [vmem:[%s205 + $0x40] sm:$0xf]
      %v306 = vld [vmem:[%s205 + $0x44] sm:$0xf]
      %v307 = vld [vmem:[%s205 + $0x48] sm:$0xf]
      %v308 = vld [vmem:[%s205 + $0x4c] sm:$0xf]
      %v309 = vld [vmem:[%s205 + $0x50] sm:$0xf]
      %v310 = vld [vmem:[%s205 + $0x54] sm:$0xf]
      %v311 = vld [vmem:[%s205 + $0x58] sm:$0xf]
      %v312 = vld [vmem:[%s205 + $0x5c] sm:$0xf]
      %v313 = vld [vmem:[%s205 + $0x60] sm:$0xf]
      %v314 = vld [vmem:[%s205 + $0x64] sm:$0xf]
      %v315 = vld [vmem:[%s205 + $0x68] sm:$0xf]
      %v316 = vld [vmem:[%s205 + $0x6c] sm:$0xf]
      %v317 = vld [vmem:[%s205 + $0x70] sm:$0xf]
      %v318 = vld [vmem:[%s205 + $0x74] sm:$0xf]
      %v319 = vld [vmem:[%s205 + $0x78] sm:$0xf]
      %v320 = vld [vmem:[%s205 + $0x7c] sm:$0xf]
      %v321 = vld [vmem:[%s211] sm:$0xf]
      %v322 = vld [vmem:[%s211 + $0x4] sm:$0xf]
      %v323 = vld [vmem:[%s211 + $0x8] sm:$0xf]
      %v324 = vld [vmem:[%s211 + $0xc] sm:$0x3]
      %v357 = vunpack.c.l.b16 %v289
      %v358 = vunpack.c.l.b16 %v290
      %v359 = vunpack.c.l.b16 %v291
      %v360 = vunpack.c.l.b16 %v292
      %v361 = vunpack.c.l.b16 %v293
      %v362 = vunpack.c.l.b16 %v294
      %v363 = vunpack.c.l.b16 %v295
      %v364 = vunpack.c.l.b16 %v296
      %v365 = vunpack.c.l.b16 %v297
      %v366 = vunpack.c.l.b16 %v298
      %v367 = vunpack.c.l.b16 %v299
      %v368 = vunpack.c.l.b16 %v300
      %v369 = vunpack.c.l.b16 %v301
      %v370 = vunpack.c.l.b16 %v302
      %v371 = vunpack.c.l.b16 %v303
      %v372 = vunpack.c.l.b16 %v304
      %v373 = vunpack.c.l.b16 %v305
      %v374 = vunpack.c.l.b16 %v306
      %v375 = vunpack.c.l.b16 %v307
      %v376 = vunpack.c.l.b16 %v308
      %v377 = vunpack.c.l.b16 %v309
      %v378 = vunpack.c.l.b16 %v310
      %v379 = vunpack.c.l.b16 %v311
      %v380 = vunpack.c.l.b16 %v312
      %v381 = vunpack.c.l.b16 %v313
      %v382 = vunpack.c.l.b16 %v314
      %v383 = vunpack.c.l.b16 %v315
      %v384 = vunpack.c.l.b16 %v316
      %v385 = vunpack.c.l.b16 %v317
      %v386 = vunpack.c.l.b16 %v318
      %v387 = vunpack.c.l.b16 %v319
      %v388 = vunpack.c.l.b16 %v320
      %v389 = vpack.c.b16 %v358, %v357
      %v390 = vpack.c.b16 %v360, %v359
      %v391 = vpack.c.b16 %v362, %v361
      %v392 = vpack.c.b16 %v364, %v363
      %v393 = vpack.c.b16 %v366, %v365
      %v394 = vpack.c.b16 %v368, %v367
      %v395 = vpack.c.b16 %v370, %v369
      %v396 = vpack.c.b16 %v372, %v371
      %v397 = vpack.c.b16 %v374, %v373
      %v398 = vpack.c.b16 %v376, %v375
      %v399 = vpack.c.b16 %v378, %v377
      %v400 = vpack.c.b16 %v380, %v379
      %v401 = vpack.c.b16 %v382, %v381
      %v402 = vpack.c.b16 %v384, %v383
      %v403 = vpack.c.b16 %v386, %v385
      %v404 = vpack.c.b16 %v388, %v387
      %v409 = vunpack.c.l.b16 %v321
      %v410 = vunpack.c.l.b16 %v322
      %v411 = vunpack.c.l.b16 %v323
      %v412 = vunpack.c.l.b16 %v324
      %v413 = vpack.c.b16 %v410, %v409
      %v414 = vpack.c.b16 %v412, %v411
      %vm416 = vcmask 220160
      %v418 = vsel %vm416, %v389, 0
      %v421 = vsel %vm416, %v390, 0
      %v424 = vsel %vm416, %v391, 0
      %v427 = vsel %vm416, %v392, 0
      %v430 = vsel %vm416, %v393, 0
      %v433 = vsel %vm416, %v394, 0
      %v436 = vsel %vm416, %v395, 0
      %v439 = vsel %vm416, %v396, 0
      %v442 = vsel %vm416, %v397, 0
      %v445 = vsel %vm416, %v398, 0
      %v448 = vsel %vm416, %v399, 0
      %v451 = vsel %vm416, %v400, 0
      %v454 = vsel %vm416, %v401, 0
      %v457 = vsel %vm416, %v402, 0
      %v460 = vsel %vm416, %v403, 0
      %v463 = vsel %vm416, %v404, 0
      %vm465 = vcmask 1044480
      %vm466 = vcmask 1045504
      %v467 = vsel %vm465, 4294967295, 65535
      %v468 = vsel %vm466, %v467, 0
      %v470 = vand.u32 %v414, %v468
      %472 = vmatpush.bf16.msra.mxu0 0
      %473 = vmatpush.bf16.msra.mxu0 0
      %474 = vmatpush.bf16.msra.mxu0 0
      %475 = vmatpush.bf16.msra.mxu0 0
      %476 = vmatpush.bf16.msra.mxu0 0
      %477 = vmatpush.bf16.msra.mxu0 0
      %478 = vmatpush.bf16.msra.mxu0 %v470
      %479 = vmatpush.bf16.msra.mxu0 %v413
      %480 = vmatmul.bf16.gmra.mxu0 %v418
      %v481 = vpop.f32.mrf.mxu0
      %v482 = vadd.f32 0.0, %v481
      %v483 = vpop.f32.mrf.mxu0
      %v484 = vadd.f32 0.0, %v483
      %485 = vmatmul.bf16.gmra.mxu0 %v421
      %v486 = vpop.f32.mrf.mxu0
      %v487 = vadd.f32 0.0, %v486
      %v488 = vpop.f32.mrf.mxu0
      %v489 = vadd.f32 0.0, %v488
      %490 = vmatmul.bf16.gmra.mxu0 %v424
      %v491 = vpop.f32.mrf.mxu0
      %v492 = vadd.f32 0.0, %v491
      %v493 = vpop.f32.mrf.mxu0
      %v494 = vadd.f32 0.0, %v493
      %495 = vmatmul.bf16.gmra.mxu0 %v427
      %v496 = vpop.f32.mrf.mxu0
      %v497 = vadd.f32 0.0, %v496
      %v498 = vpop.f32.mrf.mxu0
      %v499 = vadd.f32 0.0, %v498
      %500 = vmatmul.bf16.gmra.mxu0 %v430
      %v501 = vpop.f32.mrf.mxu0
      %v502 = vadd.f32 0.0, %v501
      %v503 = vpop.f32.mrf.mxu0
      %v504 = vadd.f32 0.0, %v503
      %505 = vmatmul.bf16.gmra.mxu0 %v433
      %v506 = vpop.f32.mrf.mxu0
      %v507 = vadd.f32 0.0, %v506
      %v508 = vpop.f32.mrf.mxu0
      %v509 = vadd.f32 0.0, %v508
      %510 = vmatmul.bf16.gmra.mxu0 %v436
      %v511 = vpop.f32.mrf.mxu0
      %v512 = vadd.f32 0.0, %v511
      %v513 = vpop.f32.mrf.mxu0
      %v514 = vadd.f32 0.0, %v513
      %515 = vmatmul.bf16.gmra.mxu0 %v439
      %v516 = vpop.f32.mrf.mxu0
      %v517 = vadd.f32 0.0, %v516
      %v518 = vpop.f32.mrf.mxu0
      %v519 = vadd.f32 0.0, %v518
      %520 = vmatmul.bf16.gmra.mxu0 %v442
      %v521 = vpop.f32.mrf.mxu0
      %v522 = vadd.f32 0.0, %v521
      %v523 = vpop.f32.mrf.mxu0
      %v524 = vadd.f32 0.0, %v523
      %525 = vmatmul.bf16.gmra.mxu0 %v445
      %v526 = vpop.f32.mrf.mxu0
      %v527 = vadd.f32 0.0, %v526
      %v528 = vpop.f32.mrf.mxu0
      %v529 = vadd.f32 0.0, %v528
      %530 = vmatmul.bf16.gmra.mxu0 %v448
      %v531 = vpop.f32.mrf.mxu0
      %v532 = vadd.f32 0.0, %v531
      %v533 = vpop.f32.mrf.mxu0
      %v534 = vadd.f32 0.0, %v533
      %535 = vmatmul.bf16.gmra.mxu0 %v451
      %v536 = vpop.f32.mrf.mxu0
      %v537 = vadd.f32 0.0, %v536
      %v538 = vpop.f32.mrf.mxu0
      %v539 = vadd.f32 0.0, %v538
      %540 = vmatmul.bf16.gmra.mxu0 %v454
      %v541 = vpop.f32.mrf.mxu0
      %v542 = vadd.f32 0.0, %v541
      %v543 = vpop.f32.mrf.mxu0
      %v544 = vadd.f32 0.0, %v543
      %545 = vmatmul.bf16.gmra.mxu0 %v457
      %v546 = vpop.f32.mrf.mxu0
      %v547 = vadd.f32 0.0, %v546
      %v548 = vpop.f32.mrf.mxu0
      %v549 = vadd.f32 0.0, %v548
      %550 = vmatmul.bf16.gmra.mxu0 %v460
      %v551 = vpop.f32.mrf.mxu0
      %v552 = vadd.f32 0.0, %v551
      %v553 = vpop.f32.mrf.mxu0
      %v554 = vadd.f32 0.0, %v553
      %555 = vmatmul.bf16.gmra.mxu0 %v463
      %v556 = vpop.f32.mrf.mxu0
      %v557 = vadd.f32 0.0, %v556
      %v558 = vpop.f32.mrf.mxu0
      %v559 = vadd.f32 0.0, %v558
      %560 = vdwg.mxu0
      %v561 = vadd.f32 %v257, %v482
      %v562 = vadd.f32 %v258, %v484
      %v563 = vadd.f32 %v259, %v487
      %v564 = vadd.f32 %v260, %v489
      %v565 = vadd.f32 %v261, %v492
      %v566 = vadd.f32 %v262, %v494
      %v567 = vadd.f32 %v263, %v497
      %v568 = vadd.f32 %v264, %v499
      %v569 = vadd.f32 %v265, %v502
      %v570 = vadd.f32 %v266, %v504
      %v571 = vadd.f32 %v267, %v507
      %v572 = vadd.f32 %v268, %v509
      %v573 = vadd.f32 %v269, %v512
      %v574 = vadd.f32 %v270, %v514
      %v575 = vadd.f32 %v271, %v517
      %v576 = vadd.f32 %v272, %v519
      %v577 = vadd.f32 %v273, %v522
      %v578 = vadd.f32 %v274, %v524
      %v579 = vadd.f32 %v275, %v527
      %v580 = vadd.f32 %v276, %v529
      %v581 = vadd.f32 %v277, %v532
      %v582 = vadd.f32 %v278, %v534
      %v583 = vadd.f32 %v279, %v537
      %v584 = vadd.f32 %v280, %v539
      %v585 = vadd.f32 %v281, %v542
      %v586 = vadd.f32 %v282, %v544
      %v587 = vadd.f32 %v283, %v547
      %v588 = vadd.f32 %v284, %v549
      %v589 = vadd.f32 %v285, %v552
      %v590 = vadd.f32 %v286, %v554
      %v591 = vadd.f32 %v287, %v557
      %v592 = vadd.f32 %v288, %v559
      %vm593 = vcmask 261120
      %594 = vst.msk [vmem:[#allocation2] sm:$0xff] %vm593, %v561
      %595 = vst.msk [vmem:[#allocation2 + $0x8] sm:$0xff] %vm593, %v562
      %596 = vst.msk [vmem:[#allocation2 + $0x10] sm:$0xff] %vm593, %v563
      %597 = vst.msk [vmem:[#allocation2 + $0x18] sm:$0xff] %vm593, %v564
      %598 = vst.msk [vmem:[#allocation2 + $0x20] sm:$0xff] %vm593, %v565
      %599 = vst.msk [vmem:[#allocation2 + $0x28] sm:$0xff] %vm593, %v566
      %600 = vst.msk [vmem:[#allocation2 + $0x30] sm:$0xff] %vm593, %v567
      %601 = vst.msk [vmem:[#allocation2 + $0x38] sm:$0xff] %vm593, %v568
      %602 = vst.msk [vmem:[#allocation2 + $0x40] sm:$0xff] %vm593, %v569
      %603 = vst.msk [vmem:[#allocation2 + $0x48] sm:$0xff] %vm593, %v570
      %604 = vst.msk [vmem:[#allocation2 + $0x50] sm:$0xff] %vm593, %v571
      %605 = vst.msk [vmem:[#allocation2 + $0x58] sm:$0xff] %vm593, %v572
      %606 = vst.msk [vmem:[#allocation2 + $0x60] sm:$0xff] %vm593, %v573
      %607 = vst.msk [vmem:[#allocation2 + $0x68] sm:$0xff] %vm593, %v574
      %608 = vst.msk [vmem:[#allocation2 + $0x70] sm:$0xff] %vm593, %v575
      %609 = vst.msk [vmem:[#allocation2 + $0x78] sm:$0xff] %vm593, %v576
      %610 = vst.msk [vmem:[#allocation2 + $0x80] sm:$0xff] %vm593, %v577
      %611 = vst.msk [vmem:[#allocation2 + $0x88] sm:$0xff] %vm593, %v578
      %612 = vst.msk [vmem:[#allocation2 + $0x90] sm:$0xff] %vm593, %v579
      %613 = vst.msk [vmem:[#allocation2 + $0x98] sm:$0xff] %vm593, %v580
      %614 = vst.msk [vmem:[#allocation2 + $0xa0] sm:$0xff] %vm593, %v581
      %615 = vst.msk [vmem:[#allocation2 + $0xa8] sm:$0xff] %vm593, %v582
      %616 = vst.msk [vmem:[#allocation2 + $0xb0] sm:$0xff] %vm593, %v583
      %617 = vst.msk [vmem:[#allocation2 + $0xb8] sm:$0xff] %vm593, %v584
      %618 = vst.msk [vmem:[#allocation2 + $0xc0] sm:$0xff] %vm593, %v585
      %619 = vst.msk [vmem:[#allocation2 + $0xc8] sm:$0xff] %vm593, %v586
      %620 = vst.msk [vmem:[#allocation2 + $0xd0] sm:$0xff] %vm593, %v587
      %621 = vst.msk [vmem:[#allocation2 + $0xd8] sm:$0xff] %vm593, %v588
      %622 = vst.msk [vmem:[#allocation2 + $0xe0] sm:$0xff] %vm593, %v589
      %623 = vst.msk [vmem:[#allocation2 + $0xe8] sm:$0xff] %vm593, %v590
      %624 = vst.msk [vmem:[#allocation2 + $0xf0] sm:$0xff] %vm593, %v591
      %625 = vst.msk [vmem:[#allocation2 + $0xf8] sm:$0xff] %vm593, %v592
      // Predicated region
      $region37: #{tpu_custom_call.1} parent=31 // pred_check
        %p626 = pneg %p220
      $region38: #{tpu_custom_call.1} parent=31 // pred_check_branch
        %628 = sbr.rel (%p626) target = $region40
      $region39: #{tpu_custom_call.1} parent=31 // pred_region
        %v629 = vld [vmem:[#allocation2] sm:$0xff]
        %v630 = vld [vmem:[#allocation2 + $0x8] sm:$0xff]
        %v631 = vld [vmem:[#allocation2 + $0x10] sm:$0xff]
        %v632 = vld [vmem:[#allocation2 + $0x18] sm:$0xff]
        %v633 = vld [vmem:[#allocation2 + $0x20] sm:$0xff]
        %v634 = vld [vmem:[#allocation2 + $0x28] sm:$0xff]
        %v635 = vld [vmem:[#allocation2 + $0x30] sm:$0xff]
        %v636 = vld [vmem:[#allocation2 + $0x38] sm:$0xff]
        %v637 = vld [vmem:[#allocation2 + $0x40] sm:$0xff]
        %v638 = vld [vmem:[#allocation2 + $0x48] sm:$0xff]
        %v639 = vld [vmem:[#allocation2 + $0x50] sm:$0xff]
        %v640 = vld [vmem:[#allocation2 + $0x58] sm:$0xff]
        %v641 = vld [vmem:[#allocation2 + $0x60] sm:$0xff]
        %v642 = vld [vmem:[#allocation2 + $0x68] sm:$0xff]
        %v643 = vld [vmem:[#allocation2 + $0x70] sm:$0xff]
        %v644 = vld [vmem:[#allocation2 + $0x78] sm:$0xff]
        %v645 = vld [vmem:[#allocation2 + $0x80] sm:$0xff]
        %v646 = vld [vmem:[#allocation2 + $0x88] sm:$0xff]
        %v647 = vld [vmem:[#allocation2 + $0x90] sm:$0xff]
        %v648 = vld [vmem:[#allocation2 + $0x98] sm:$0xff]
        %v649 = vld [vmem:[#allocation2 + $0xa0] sm:$0xff]
        %v650 = vld [vmem:[#allocation2 + $0xa8] sm:$0xff]
        %v651 = vld [vmem:[#allocation2 + $0xb0] sm:$0xff]
        %v652 = vld [vmem:[#allocation2 + $0xb8] sm:$0xff]
        %v653 = vld [vmem:[#allocation2 + $0xc0] sm:$0xff]
        %v654 = vld [vmem:[#allocation2 + $0xc8] sm:$0xff]
        %v655 = vld [vmem:[#allocation2 + $0xd0] sm:$0xff]
        %v656 = vld [vmem:[#allocation2 + $0xd8] sm:$0xff]
        %v657 = vld [vmem:[#allocation2 + $0xe0] sm:$0xff]
        %v658 = vld [vmem:[#allocation2 + $0xe8] sm:$0xff]
        %v659 = vld [vmem:[#allocation2 + $0xf0] sm:$0xff]
        %v660 = vld [vmem:[#allocation2 + $0xf8] sm:$0xff]
        %v661 = vld [vmem:[%s2] sm:$0x1]
        %v663 = vperm.slane %v661, 0
        %v665 = vadd.f32 %v629, %v663
        %v666 = vadd.f32 %v630, %v663
        %v667 = vadd.f32 %v631, %v663
        %v668 = vadd.f32 %v632, %v663
        %v669 = vadd.f32 %v633, %v663
        %v670 = vadd.f32 %v634, %v663
        %v671 = vadd.f32 %v635, %v663
        %v672 = vadd.f32 %v636, %v663
        %v673 = vadd.f32 %v637, %v663
        %v674 = vadd.f32 %v638, %v663
        %v675 = vadd.f32 %v639, %v663
        %v676 = vadd.f32 %v640, %v663
        %v677 = vadd.f32 %v641, %v663
        %v678 = vadd.f32 %v642, %v663
        %v679 = vadd.f32 %v643, %v663
        %v680 = vadd.f32 %v644, %v663
        %v681 = vadd.f32 %v645, %v663
        %v682 = vadd.f32 %v646, %v663
        %v683 = vadd.f32 %v647, %v663
        %v684 = vadd.f32 %v648, %v663
        %v685 = vadd.f32 %v649, %v663
        %v686 = vadd.f32 %v650, %v663
        %v687 = vadd.f32 %v651, %v663
        %v688 = vadd.f32 %v652, %v663
        %v689 = vadd.f32 %v653, %v663
        %v690 = vadd.f32 %v654, %v663
        %v691 = vadd.f32 %v655, %v663
        %v692 = vadd.f32 %v656, %v663
        %v693 = vadd.f32 %v657, %v663
        %v694 = vadd.f32 %v658, %v663
        %v695 = vadd.f32 %v659, %v663
        %v696 = vadd.f32 %v660, %v663
        %v697 = vmax.f32 %v665, 0.0
        %v698 = vmax.f32 %v666, 0.0
        %v699 = vmax.f32 %v667, 0.0
        %v700 = vmax.f32 %v668, 0.0
        %v701 = vmax.f32 %v669, 0.0
        %v702 = vmax.f32 %v670, 0.0
        %v703 = vmax.f32 %v671, 0.0
        %v704 = vmax.f32 %v672, 0.0
        %v705 = vmax.f32 %v673, 0.0
        %v706 = vmax.f32 %v674, 0.0
        %v707 = vmax.f32 %v675, 0.0
        %v708 = vmax.f32 %v676, 0.0
        %v709 = vmax.f32 %v677, 0.0
        %v710 = vmax.f32 %v678, 0.0
        %v711 = vmax.f32 %v679, 0.0
        %v712 = vmax.f32 %v680, 0.0
        %v713 = vmax.f32 %v681, 0.0
        %v714 = vmax.f32 %v682, 0.0
        %v715 = vmax.f32 %v683, 0.0
        %v716 = vmax.f32 %v684, 0.0
        %v717 = vmax.f32 %v685, 0.0
        %v718 = vmax.f32 %v686, 0.0
        %v719 = vmax.f32 %v687, 0.0
        %v720 = vmax.f32 %v688, 0.0
        %v721 = vmax.f32 %v689, 0.0
        %v722 = vmax.f32 %v690, 0.0
        %v723 = vmax.f32 %v691, 0.0
        %v724 = vmax.f32 %v692, 0.0
        %v725 = vmax.f32 %v693, 0.0
        %v726 = vmax.f32 %v694, 0.0
        %v727 = vmax.f32 %v695, 0.0
        %v728 = vmax.f32 %v696, 0.0
        %v729 = vpack.c.bf16 %v697, %v697
        %v730 = vpack.c.bf16 %v698, %v698
        %v731 = vpack.c.bf16 %v699, %v699
        %v732 = vpack.c.bf16 %v700, %v700
        %v733 = vpack.c.bf16 %v701, %v701
        %v734 = vpack.c.bf16 %v702, %v702
        %v735 = vpack.c.bf16 %v703, %v703
        %v736 = vpack.c.bf16 %v704, %v704
        %v737 = vpack.c.bf16 %v705, %v705
        %v738 = vpack.c.bf16 %v706, %v706
        %v739 = vpack.c.bf16 %v707, %v707
        %v740 = vpack.c.bf16 %v708, %v708
        %v741 = vpack.c.bf16 %v709, %v709
        %v742 = vpack.c.bf16 %v710, %v710
        %v743 = vpack.c.bf16 %v711, %v711
        %v744 = vpack.c.bf16 %v712, %v712
        %v745 = vpack.c.bf16 %v713, %v713
        %v746 = vpack.c.bf16 %v714, %v714
        %v747 = vpack.c.bf16 %v715, %v715
        %v748 = vpack.c.bf16 %v716, %v716
        %v749 = vpack.c.bf16 %v717, %v717
        %v750 = vpack.c.bf16 %v718, %v718
        %v751 = vpack.c.bf16 %v719, %v719
        %v752 = vpack.c.bf16 %v720, %v720
        %v753 = vpack.c.bf16 %v721, %v721
        %v754 = vpack.c.bf16 %v722, %v722
        %v755 = vpack.c.bf16 %v723, %v723
        %v756 = vpack.c.bf16 %v724, %v724
        %v757 = vpack.c.bf16 %v725, %v725
        %v758 = vpack.c.bf16 %v726, %v726
        %v759 = vpack.c.bf16 %v727, %v727
        %v760 = vpack.c.bf16 %v728, %v728
        %vm761 = vcmask 257024
        %762 = vst.msk [vmem:[%s217] sm:$0xf] %vm761, %v729
        %763 = vst.msk [vmem:[%s217 + $0x4] sm:$0xf] %vm761, %v730
        %764 = vst.msk [vmem:[%s217 + $0x8] sm:$0xf] %vm761, %v731
        %765 = vst.msk [vmem:[%s217 + $0xc] sm:$0xf] %vm761, %v732
        %766 = vst.msk [vmem:[%s217 + $0x10] sm:$0xf] %vm761, %v733
        %767 = vst.msk [vmem:[%s217 + $0x14] sm:$0xf] %vm761, %v734
        %768 = vst.msk [vmem:[%s217 + $0x18] sm:$0xf] %vm761, %v735
        %769 = vst.msk [vmem:[%s217 + $0x1c] sm:$0xf] %vm761, %v736
        %770 = vst.msk [vmem:[%s217 + $0x20] sm:$0xf] %vm761, %v737
        %771 = vst.msk [vmem:[%s217 + $0x24] sm:$0xf] %vm761, %v738
        %772 = vst.msk [vmem:[%s217 + $0x28] sm:$0xf] %vm761, %v739
        %773 = vst.msk [vmem:[%s217 + $0x2c] sm:$0xf] %vm761, %v740
        %774 = vst.msk [vmem:[%s217 + $0x30] sm:$0xf] %vm761, %v741
        %775 = vst.msk [vmem:[%s217 + $0x34] sm:$0xf] %vm761, %v742
        %776 = vst.msk [vmem:[%s217 + $0x38] sm:$0xf] %vm761, %v743
        %777 = vst.msk [vmem:[%s217 + $0x3c] sm:$0xf] %vm761, %v744
        %778 = vst.msk [vmem:[%s217 + $0x40] sm:$0xf] %vm761, %v745
        %779 = vst.msk [vmem:[%s217 + $0x44] sm:$0xf] %vm761, %v746
        %780 = vst.msk [vmem:[%s217 + $0x48] sm:$0xf] %vm761, %v747
        %781 = vst.msk [vmem:[%s217 + $0x4c] sm:$0xf] %vm761, %v748
        %782 = vst.msk [vmem:[%s217 + $0x50] sm:$0xf] %vm761, %v749
        %783 = vst.msk [vmem:[%s217 + $0x54] sm:$0xf] %vm761, %v750
        %784 = vst.msk [vmem:[%s217 + $0x58] sm:$0xf] %vm761, %v751
        %785 = vst.msk [vmem:[%s217 + $0x5c] sm:$0xf] %vm761, %v752
        %786 = vst.msk [vmem:[%s217 + $0x60] sm:$0xf] %vm761, %v753
        %787 = vst.msk [vmem:[%s217 + $0x64] sm:$0xf] %vm761, %v754
        %788 = vst.msk [vmem:[%s217 + $0x68] sm:$0xf] %vm761, %v755
        %789 = vst.msk [vmem:[%s217 + $0x6c] sm:$0xf] %vm761, %v756
        %790 = vst.msk [vmem:[%s217 + $0x70] sm:$0xf] %vm761, %v757
        %791 = vst.msk [vmem:[%s217 + $0x74] sm:$0xf] %vm761, %v758
        %792 = vst.msk [vmem:[%s217 + $0x78] sm:$0xf] %vm761, %v759
        %793 = vst.msk [vmem:[%s217 + $0x7c] sm:$0xf] %vm761, %v760
      $region40: #{tpu_custom_call.1} parent=31 // pred_fallthru
        _
      %s794 = smul.u32 32, %s18
      %p795 = scmp.lt.s32.totalorder %s794, 351
      %s796 = scalar_select %p795, %s794, 351
      %s797 = smul.addr %s796, 4
      %s798 = scalar_lea.vmem %s3, %s797
      // Predicated region
      $region41: #{tpu_custom_call.1} parent=31 // pred_check
        %p799 = pneg %p119
      $region42: #{tpu_custom_call.1} parent=31 // pred_check_branch
        %801 = sbr.rel (%p799) target = $region44
      $region43: #{tpu_custom_call.1} parent=31 // pred_region
        %s802 = smul.u32 32, %s18
      $region44: #{tpu_custom_call.1} parent=31 // pred_fallthru
        _
    $region32: #{tpu_custom_call.1} parent=5 // pred_fallthru
      _
    %p803 = scmp.le.s32.totalorder 2, %s9
    // Predicated region
    $region45: #{tpu_custom_call.1} parent=5 // pred_check
      %p804 = pneg %p803
    $region46: #{tpu_custom_call.1} parent=5 // pred_check_branch
      %806 = sbr.rel (%p804) target = $region48
    $region47: #{tpu_custom_call.1} parent=5 // pred_region
      %s807 = ssub.s32 %s9, 2
      // Predicated region
      $region49: #{tpu_custom_call.1} parent=47 // pred_check
        %p808 = pneg %p125
      $region50: #{tpu_custom_call.1} parent=47 // pred_check_branch
        %810 = sbr.rel (%p808) target = $region52
      $region51: #{tpu_custom_call.1} parent=47 // pred_region
        %s811 = smul.u32 32, %s20
        %p812 = scmp.lt.s32.totalorder %s811, 351
        %s813 = scalar_select %p812, %s811, 351
        %s814 = smul.addr %s813, 4
        %s815 = scalar_lea.vmem %s3, %s814
      $region52: #{tpu_custom_call.1} parent=47 // pred_fallthru
        _
    $region48: #{tpu_custom_call.1} parent=5 // pred_fallthru
      _
  $region6: #{tpu_custom_call.1} parent=0 // loop_footer
    %s13 = sadd.s32 1, %s9
  $region7: #{tpu_custom_call.1} parent=0 // loop_footer_branch
    %8 = sbr.rel target = $region3
  $region8: #{tpu_custom_call.1} parent=0 // loop_exit
    _

</llo_original>
